<compile_context>
chip_gen: v7x
topology: tpu7x:2x2x1
jax: 0.10.0
libtpu: 0.0.40
codegen_flags: <defaults>
</compile_context>

<pallas_src>
import jax
import jax.numpy as jnp
from jax.experimental import pallas as pl
from jax.experimental.pallas import tpu as pltpu


def _mean_axis1_kernel(x_ref, o_ref):
    # x_ref: (TB, C, TF) block, o_ref: (TB, TF) block.
    x = x_ref[...]
    # Accumulate in f32 (identity for f32 inputs), cast back to output dtype.
    o_ref[...] = jnp.mean(x.astype(jnp.float32), axis=1).astype(o_ref.dtype)


def _pick_lane_tile(feat: int) -> int:
    """Largest 128-multiple divisor of `feat` up to 8192, else full extent."""
    if feat % 128 != 0:
        return feat  # full-dim block satisfies the (8,128) rule
    for cand in (8192, 4096, 2048, 1024, 512, 256, 128):
        if cand <= feat and feat % cand == 0:
            return cand
    return feat


def _pick_batch_tile(batch: int) -> int:
    """Multiple-of-8 divisor of `batch` up to 64, else full extent."""
    if batch % 8 != 0:
        return batch  # full-dim block satisfies the (8,128) rule
    for cand in (64, 32, 16, 8):
        if cand <= batch and batch % cand == 0:
            return cand
    return batch


def mean_axis1(x: jax.Array) -> jax.Array:
    """Pallas equivalent of torch.mean(x, axis=1) for (N, C, ...) inputs."""
    batch, chan = x.shape[0], x.shape[1]
    spatial = x.shape[2:]
    feat = 1
    for d in spatial:
        feat *= d

    # Collapse trailing dims into one lane axis (metadata-only reshape).
    x3 = x.reshape(batch, chan, feat)

    tb = _pick_batch_tile(batch)
    tf = _pick_lane_tile(feat)

    dtype_bytes = jnp.dtype(x.dtype).itemsize
    cost = pl.CostEstimate(
        flops=batch * chan * feat,  # ~C adds+scale per output element
        transcendentals=0,
        bytes_accessed=(batch * chan * feat + batch * feat) * dtype_bytes,
    )

    out2d = pl.pallas_call(
        _mean_axis1_kernel,
        out_shape=jax.ShapeDtypeStruct((batch, feat), x.dtype),
        grid_spec=pltpu.PrefetchScalarGridSpec(
            num_scalar_prefetch=0,
            grid=(batch // tb, feat // tf),
            in_specs=[pl.BlockSpec((tb, chan, tf), lambda i, j: (i, 0, j))],
            out_specs=pl.BlockSpec((tb, tf), lambda i, j: (i, j)),
        ),
        compiler_params=pltpu.CompilerParams(
            dimension_semantics=("parallel", "parallel"),
        ),
        cost_estimate=cost,
    )(x3)

    # Restore the spatial shape (metadata-only reshape).
    return out2d.reshape((batch,) + spatial)


if __name__ == "__main__":
    key = jax.random.PRNGKey(0)
    # Small NCHW input consistent with a VAE conv feature map.
    x = jax.random.normal(key, (2, 4, 16, 16), dtype=jnp.float32)

    y = mean_axis1(x)
    y = jax.block_until_ready(y)

    # Verify against the reference semantics of torch.mean(x, axis=1).
    y_ref = jnp.mean(x, axis=1)
    assert y.shape == (2, 16, 16), y.shape
    assert y.dtype == x.dtype
    assert bool(jnp.allclose(y, y_ref, atol=1e-6, rtol=1e-6))

    print("KERNEL_OK")
</pallas_src>

<mosaic_0001>
module attributes {stable_mosaic.version = 11 : i64} {
  func.func @_mean_axis1_kernel(%arg0: i32, %arg1: i32, %arg2: memref<2x4x256xf32, #tpu.memory_space<vmem>>, %arg3: memref<2x256xf32, #tpu.memory_space<vmem>>) attributes {dimension_semantics = [#tpu.dimension_semantics<parallel>, #tpu.dimension_semantics<parallel>], iteration_bounds = array<i64: 1, 1>, scalar_prefetch = 0 : i64, scratch_operands = 0 : i64, tpu.core_type = #tpu.core_type<tc>, window_params = [{transform_indices = @transform_0, window_bounds = array<i64: 2, 4, 256>}, {transform_indices = @transform_1, window_bounds = array<i64: 2, 256>}]} {
    %c0 = arith.constant 0 : index
    %c0_0 = arith.constant 0 : index
    %c0_1 = arith.constant 0 : index
    %0 = vector.load %arg2[%c0, %c0_0, %c0_1] : memref<2x4x256xf32, #tpu.memory_space<vmem>>, vector<2x4x256xf32>
    %cst = arith.constant dense<0.000000e+00> : vector<2x256xf32>
    %1 = vector.multi_reduction <add>, %0, %cst [1] : vector<2x4x256xf32> to vector<2x256xf32>
    %cst_2 = arith.constant 4.000000e+00 : f32
    %2 = vector.broadcast %cst_2 : f32 to vector<2x256xf32>
    %3 = arith.divf %1, %2 : vector<2x256xf32>
    %c0_3 = arith.constant 0 : index
    %c0_4 = arith.constant 0 : index
    %4 = vector.load %arg3[%c0_3, %c0_4] : memref<2x256xf32, #tpu.memory_space<vmem>>, vector<2x256xf32>
    tpu.vector_store %arg3[%c0_3, %c0_4], %3 {strides = array<i32>} : memref<2x256xf32, #tpu.memory_space<vmem>>, vector<2x256xf32>,
    return
  }
  func.func @transform_0(%arg0: i32, %arg1: i32) -> (i32, i32, i32) {
    %c0_i32 = arith.constant 0 : i32
    %c0_i32_0 = arith.constant 0 : i32
    return %arg0, %c0_i32, %arg1 : i32, i32, i32
  }
  func.func @transform_1(%arg0: i32, %arg1: i32) -> (i32, i32) {
    %c0_i32 = arith.constant 0 : i32
    return %arg0, %arg1 : i32, i32
  }
}

</mosaic_0001>

<llo_original>
// kernel: tpu_custom_call.1
$region0: #{tpu_custom_call.1}
  #allocation0 [shape = 'u32[]', space=smem, size = 0x4, offset = 0x4, fixed_abs, tag = 'smem constant byte address 0x4 - core index']
  #allocation1 [shape = 'u32[144,128]{1,0:T(1,128)}', space=vmem, size = 0x12000, scoped, tag = 'internal scratch']
  %s0 = inlined_call_operand.hbm [shape: f32[2,4,256], index: 0, kind: input, shape index: {}]
  %s1 = inlined_call_operand.hbm [shape: f32[2,256], index: 1, kind: output, shape index: {}]
  %s2 = sld [smem:[#allocation0]]
  $region18: #{tpu_custom_call.1} parent=0
    _
  %s4 = ssub.s32 1, %s2
  %s5 = scalar_select 0, %s4, %s2
  $region1: #{tpu_custom_call.1} parent=0
    #allocation2 [shape = 'u8[8192]{0}', space=vmem, size = 0x2000, scoped, tag = 'input window, operand 0, single buffered']
    #allocation3 [shape = 's32[1]{0}', space=sflag, size = 0x4, scoped, tag = 'scoped memory for tpu_custom_call.1']
    #allocation4 [shape = 's32[1]{0}', space=sflag, size = 0x4, scoped, tag = 'scoped memory for tpu_custom_call.1']
    #allocation5 [shape = 'u8[2048]{0}', space=vmem, size = 0x800, scoped, tag = 'output window, operand 0, single buffered']
    %6 = vsyncpa [#allocation3], 0
    %7 = vsyncpa [#allocation4], 0
    // Predicated region
    $region2: #{tpu_custom_call.1} parent=1 // pred_check
      _
    $region3: #{tpu_custom_call.1} parent=1 // pred_check_branch
      %9 = sbr.rel (0) target = $region5
    $region4: #{tpu_custom_call.1} parent=1 // pred_region
      %s11 = ssub.s32 256, 256
      %12 = vsyncadd [#allocation3], %s11
      %s13 = sshll.u32 [#allocation2], 4
      %s14 = int_to_ptr.vmem [resolvable:$true] %s13
      %19 = dma.hbm_to_vmem [thread:$0]  %s0, 256, %s14, [#allocation3], 128, 128, 8
    $region5: #{tpu_custom_call.1} parent=1 // pred_fallthru
      _
    // Predicated region
    $region6: #{tpu_custom_call.1} parent=1 // pred_check
      _
    $region7: #{tpu_custom_call.1} parent=1 // pred_check_branch
      %21 = sbr.rel (0) target = $region9
    $region8: #{tpu_custom_call.1} parent=1 // pred_region
      %22 = dma.done [#allocation3], 256
    $region9: #{tpu_custom_call.1} parent=1 // pred_fallthru
      _
    %v23 = vld [vmem:[#allocation2] sm:$0xff]
    %v24 = vld [vmem:[#allocation2 + $0x8] sm:$0xff]
    %v27 = vcombine.high %v23, %v23
    %v28 = vcombine.high %v24, %v24
    %vm31 = vcmask 1043456
    %v32 = vsel %vm31, %v23, 0.0
    %v33 = vrot.slane %v32, 4
    %v34 = vadd.f32 %v32, %v33
    %v35 = vrot.slane %v34, 2
    %v36 = vadd.f32 %v34, %v35
    %v37 = vrot.slane %v36, 1
    %v38 = vadd.f32 %v36, %v37
    %v39 = vsel %vm31, %v27, 0.0
    %v40 = vrot.slane %v39, 4
    %v41 = vadd.f32 %v39, %v40
    %v42 = vrot.slane %v41, 2
    %v43 = vadd.f32 %v41, %v42
    %v44 = vrot.slane %v43, 1
    %v45 = vadd.f32 %v43, %v44
    %v46 = vsel %vm31, %v24, 0.0
    %v47 = vrot.slane %v46, 4
    %v48 = vadd.f32 %v46, %v47
    %v49 = vrot.slane %v48, 2
    %v50 = vadd.f32 %v48, %v49
    %v51 = vrot.slane %v50, 1
    %v52 = vadd.f32 %v50, %v51
    %v53 = vsel %vm31, %v28, 0.0
    %v54 = vrot.slane %v53, 4
    %v55 = vadd.f32 %v53, %v54
    %v56 = vrot.slane %v55, 2
    %v57 = vadd.f32 %v55, %v56
    %v58 = vrot.slane %v57, 1
    %v59 = vadd.f32 %v57, %v58
    %v60 = vrcp.pop 4.0
    %v61 = vmul.f32 %v38, %v60
    %v62 = vmul.f32 %v45, %v60
    %v63 = vmul.f32 %v52, %v60
    %v64 = vmul.f32 %v59, %v60
    %v69 = vcombine.low %v61, %v62
    %v71 = vunpack.c.l.s4 1983009808
    %v72 = vunpack.c.0.s8 %v71
    %v73 = vlaneseq
    %v74 = vshrl.u32 %v73, 7
    %v75 = vsub.s32 %v72, %v74
    %v76 = vrot.slane %v69, %v75
    %v77 = vcombine.low %v63, %v64
    %v79 = vunpack.c.l.s4 1983009808
    %v80 = vunpack.c.0.s8 %v79
    %v81 = vlaneseq
    %v82 = vshrl.u32 %v81, 7
    %v83 = vsub.s32 %v80, %v82
    %v84 = vrot.slane %v77, %v83
    %vm85 = vcmask 1044484
    %v86 = vsel %vm85, %v76, %v76
    %vm87 = vcmask 1046534
    %v88 = vsel %vm87, %v76, %v86
    %v89 = vrot.slane %v84, 7
    %vm90 = vcmask 1041409
    %v91 = vsel %vm90, %v89, %v88
    %vm92 = vcmask 1043459
    %v93 = vsel %vm92, %v89, %v91
    %vm94 = vcmask 1045509
    %v95 = vsel %vm94, %v89, %v93
    %vm96 = vcmask 1047559
    %v97 = vsel %vm96, %v89, %v95
    %99 = vst [vmem:[#allocation5] sm:$0xf] %v97
    // Predicated region
    $region10: #{tpu_custom_call.1} parent=1 // pred_check
      _
    $region11: #{tpu_custom_call.1} parent=1 // pred_check_branch
      %101 = sbr.rel (0) target = $region13
    $region12: #{tpu_custom_call.1} parent=1 // pred_region
      %s103 = ssub.s32 64, 64
      %104 = vsyncadd [#allocation4], %s103
      %s106 = sshll.u32 [#allocation5], 4
      %s107 = int_to_ptr.vmem [resolvable:$true] %s106
      %109 = dma.vmem_to_hbm [thread:$0]  %s107, 64, %s1, [#allocation4]
    $region13: #{tpu_custom_call.1} parent=1 // pred_fallthru
      _
    // Predicated region
    $region14: #{tpu_custom_call.1} parent=1 // pred_check
      _
    $region15: #{tpu_custom_call.1} parent=1 // pred_check_branch
      %111 = sbr.rel (0) target = $region17
    $region16: #{tpu_custom_call.1} parent=1 // pred_region
      %112 = dma.done [#allocation4], 64
    $region17: #{tpu_custom_call.1} parent=1 // pred_fallthru
      _
    %113 = vsyncpa [#allocation3], 1
    %114 = vsyncpa [#allocation4], 1

</llo_original>
